<compile_context>
chip_gen: v6e
topology: v6e:2x2x1
jax: 0.10.0
libtpu: 0.0.40
codegen_flags: <defaults>
</compile_context>

<pallas_src>
import functools

import jax
import jax.numpy as jnp
from jax.experimental import pallas as pl
from jax.experimental.pallas import tpu as pltpu


# --------------------------------------------------------------------------- #
# One-time parameter preparation (do NOT call per forward pass).
# --------------------------------------------------------------------------- #
def prepare_params(params, *, compute_dtype=jnp.bfloat16):
    """Fuse / pad / cast the PyTorch-style parameters once.

    Returns a dict of device arrays ready for the kernel:
      wih : (F_pad, 4H1) bf16   -- W_ih.T, F zero-padded to 16-mult, g-cols x2
      whh : (H1, 4H1)   bf16    -- W_hh.T, g-cols x2
      b   : (1, 4H1)    f32     -- b_ih + b_hh, g slice x2
      w1  : (H1, H2)    bf16
      b1  : (1, H2)     f32
      w2  : (H2, C_pad) bf16    -- zero-padded to lane-dense 128-wide slab
      b2  : (1, C_pad)  f32
    """
    F = params["w_ih"].shape[0]
    H1 = params["w_hh"].shape[0]
    H2 = params["w_fc1"].shape[1]
    C = params["w_fc2"].shape[1]
    F_pad = ((F + 15) // 16) * 16          # bf16 sublane packing on the K dim
    C_pad = ((C + 127) // 128) * 128       # lane-dense output (unmasked vst)

    # Pre-scale the g-gate columns by 2 (gate order [i, f, g, o]) so the kernel
    # needs only one sigmoid per step: tanh(g) = 2*sigmoid(2g) - 1.
    g_scale = jnp.ones((4 * H1,), jnp.float32).at[2 * H1:3 * H1].set(2.0)

    wih = params["w_ih"].astype(jnp.float32) * g_scale[None, :]
    wih = (jnp.zeros((F_pad, 4 * H1), jnp.float32).at[:F, :].set(wih)
           .astype(compute_dtype))
    whh = (params["w_hh"].astype(jnp.float32) * g_scale[None, :]).astype(compute_dtype)
    b = ((params["b_ih"] + params["b_hh"]).astype(jnp.float32) * g_scale
         ).reshape(1, 4 * H1)

    w1 = params["w_fc1"].astype(compute_dtype)
    b1 = params["b_fc1"].astype(jnp.float32).reshape(1, H2)
    w2 = (jnp.zeros((H2, C_pad), jnp.float32).at[:, :C].set(params["w_fc2"])
          .astype(compute_dtype))
    b2 = jnp.zeros((1, C_pad), jnp.float32).at[:, :C].set(params["b_fc2"])

    return {"wih": wih, "whh": whh, "b": b, "w1": w1, "b1": b1, "w2": w2, "b2": b2}


# --------------------------------------------------------------------------- #
# Jitted forward: x preprocessing + single pallas_call + slice, one HLO region.
# --------------------------------------------------------------------------- #
@functools.partial(jax.jit, static_argnames=("num_classes",))
def cs_classifier_lstm_forward(x, prepped, *, num_classes):
    """x: (B, T, F) float32 (batch_first). Returns (B, num_classes) f32 logits."""
    B, T, F = x.shape
    wih, whh = prepped["wih"], prepped["whh"]
    b, w1, b1, w2, b2 = prepped["b"], prepped["w1"], prepped["b1"], prepped["w2"], prepped["b2"]
    F_pad, H1 = wih.shape[0], whh.shape[0]
    H2, C_pad = w2.shape
    C = num_classes
    cdt = wih.dtype

    # Time-major, flattened, zero-padded on the feature (contraction) dim.
    x_tm = jnp.transpose(x, (1, 0, 2)).reshape(T * B, F)
    x_tm = jnp.pad(x_tm, ((0, 0), (0, F_pad - F))).astype(cdt)

    def kernel(x_ref, wih_ref, whh_ref, b_ref, w1_ref, b1_ref, w2_ref, b2_ref, out_ref):
        # ---- hoisted input projection for all timesteps (no serial dependence) ----
        xg = (jnp.dot(x_ref[...], wih_ref[...], preferred_element_type=jnp.float32)
              + b_ref[...])                                             # (T*B, 4H1) f32

        whh_v = whh_ref[...]                                            # loop-invariant load

        h = jnp.zeros((B, H1), jnp.float32)
        c = jnp.zeros((B, H1), jnp.float32)

        # Recurrence, fully unrolled at trace time (T small / static); critical
        # path per step is one (B,H1)@(H1,4H1) dot + one full-vreg sigmoid.
        # TODO(synk): for larger T switch to lax.fori_loop with xg in VMEM scratch.
        for t in range(T):
            gates = xg[t * B:(t + 1) * B, :] + jnp.dot(
                h.astype(whh_v.dtype), whh_v, preferred_element_type=jnp.float32)
            # ONE sigmoid over the whole (B, 4H1) vreg; the g columns were
            # pre-scaled by 2 at prep time, so tanh(g) = 2*sigmoid(2g) - 1.
            sg = jax.nn.sigmoid(gates)
            i_g = sg[:, 0 * H1:1 * H1]
            f_g = sg[:, 1 * H1:2 * H1]
            g_t = 2.0 * sg[:, 2 * H1:3 * H1] - 1.0
            o_g = sg[:, 3 * H1:4 * H1]
            c = f_g * c + i_g * g_t
            h = o_g * jnp.tanh(c)

        # ---- dense head on hn ----
        # TODO(synk): nn.Dropout is identity in eval mode; training-mode dropout
        # would need pltpu.prng_seed / stateful_bernoulli here.
        z = (jnp.dot(h.astype(w1_ref.dtype), w1_ref[...],
                     preferred_element_type=jnp.float32) + b1_ref[...])
        z = jnp.maximum(z, 0.0)                                         # ReLU
        out = (jnp.dot(z.astype(w2_ref.dtype), w2_ref[...],
                       preferred_element_type=jnp.float32) + b2_ref[...])
        out_ref[...] = out.astype(out_ref.dtype)

    # Advisory cost model for XLA's scheduler (this is a microsecond-scale call).
    flops = (2 * T * B * F_pad * 4 * H1        # hoisted input projection
             + T * 2 * B * H1 * 4 * H1         # recurrent h @ W_hh
             + 2 * B * H1 * H2                 # fc_1
             + 2 * B * H2 * C_pad)             # fc
    transcendentals = T * (B * 4 * H1 + B * H1)   # per-step sigmoid + tanh(c)
    bytes_accessed = (x_tm.size * 2 + wih.size * 2 + whh.size * 2 + b.size * 4
                      + w1.size * 2 + b1.size * 4 + w2.size * 2 + b2.size * 4
                      + B * C_pad * 4)

    vmem = pl.BlockSpec(memory_space=pltpu.MemorySpace.VMEM)
    out_padded = pl.pallas_call(
        kernel,
        out_shape=jax.ShapeDtypeStruct((B, C_pad), jnp.float32),
        in_specs=[vmem] * 8,
        out_specs=vmem,
        cost_estimate=pl.CostEstimate(flops=int(flops),
                                      transcendentals=int(transcendentals),
                                      bytes_accessed=int(bytes_accessed)),
    )(x_tm, wih, whh, b, w1, b1, w2, b2)

    return out_padded[:, :C]


# --------------------------------------------------------------------------- #
# Pure-JAX reference (mirrors the kernel's bf16-MXU / f32-accumulation numerics,
# but uses unscaled weights and exact sigmoid/tanh).
# --------------------------------------------------------------------------- #
def _reference_forward(x, params, *, compute_dtype=jnp.bfloat16):
    B, T, F = x.shape
    H1 = params["w_hh"].shape[0]
    cdt = compute_dtype
    wih = params["w_ih"].astype(cdt)
    whh = params["w_hh"].astype(cdt)
    b = (params["b_ih"] + params["b_hh"]).astype(jnp.float32)

    def step(carry, x_t):
        h, c = carry
        gates = (jnp.dot(x_t.astype(cdt), wih, preferred_element_type=jnp.float32)
                 + jnp.dot(h.astype(cdt), whh, preferred_element_type=jnp.float32) + b)
        i = jax.nn.sigmoid(gates[:, 0 * H1:1 * H1])
        f = jax.nn.sigmoid(gates[:, 1 * H1:2 * H1])
        g = jnp.tanh(gates[:, 2 * H1:3 * H1])
        o = jax.nn.sigmoid(gates[:, 3 * H1:4 * H1])
        c = f * c + i * g
        h = o * jnp.tanh(c)
        return (h, c), None

    h0 = jnp.zeros((B, H1), jnp.float32)
    (hn, _), _ = jax.lax.scan(step, (h0, h0), jnp.transpose(x, (1, 0, 2)))
    z = jnp.maximum(
        jnp.dot(hn.astype(cdt), params["w_fc1"].astype(cdt),
                preferred_element_type=jnp.float32) + params["b_fc1"], 0.0)
    return (jnp.dot(z.astype(cdt), params["w_fc2"].astype(cdt),
                    preferred_element_type=jnp.float32) + params["b_fc2"])


def _init_params(key, input_size, hidden_size1, hidden_size2, num_classes):
    """Deterministic synthetic parameters (PyTorch-style uniform init ranges)."""
    ks = jax.random.split(key, 8)
    k_lstm = 1.0 / jnp.sqrt(hidden_size1)
    k1 = 1.0 / jnp.sqrt(hidden_size1)
    k2 = 1.0 / jnp.sqrt(hidden_size2)
    u = lambda k, shape, lim: jax.random.uniform(k, shape, jnp.float32, -lim, lim)
    return {
        # stored pre-transposed relative to PyTorch (weight.T) for row-major matmuls
        "w_ih": u(ks[0], (input_size, 4 * hidden_size1), k_lstm),
        "w_hh": u(ks[1], (hidden_size1, 4 * hidden_size1), k_lstm),
        "b_ih": u(ks[2], (4 * hidden_size1,), k_lstm),
        "b_hh": u(ks[3], (4 * hidden_size1,), k_lstm),
        "w_fc1": u(ks[4], (hidden_size1, hidden_size2), k1),
        "b_fc1": u(ks[5], (hidden_size2,), k1),
        "w_fc2": u(ks[6], (hidden_size2, num_classes), k2),
        "b_fc2": u(ks[7], (num_classes,), k2),
    }


if __name__ == "__main__":
    # Small shapes consistent with the module: 13 features, 3 classes.
    B, T, F = 8, 8, 13
    H1, H2, C = 32, 16, 3

    key = jax.random.PRNGKey(0)
    k_x, k_p = jax.random.split(key)
    x = jax.random.normal(k_x, (B, T, F), jnp.float32)
    params = _init_params(k_p, F, H1, H2, C)

    # One-time prep (cache these across calls); the jitted forward only does the
    # x transpose/pad/cast + the pallas_call + the output slice.
    prepped = prepare_params(params)

    out = jax.block_until_ready(cs_classifier_lstm_forward(x, prepped, num_classes=C))
    ref = jax.block_until_ready(_reference_forward(x, params))

    assert out.shape == (B, C)
    # Kernel and reference both use bf16 MXU inputs with f32 accumulation; the
    # 2*sigmoid(2g)-1 reformulation is exact up to EUP rounding, so only
    # summation-order / transcendental-approximation differences remain.
    assert jnp.allclose(out, ref, rtol=2e-3, atol=2e-3), "mismatch vs JAX reference"

    print("KERNEL_OK")
</pallas_src>

<mosaic_0001>
module attributes {stable_mosaic.version = 11 : i64} {
  func.func @kernel(%arg0: memref<64x16xbf16, #tpu.memory_space<vmem>>, %arg1: memref<16x128xbf16, #tpu.memory_space<vmem>>, %arg2: memref<32x128xbf16, #tpu.memory_space<vmem>>, %arg3: memref<1x128xf32, #tpu.memory_space<vmem>>, %arg4: memref<32x16xbf16, #tpu.memory_space<vmem>>, %arg5: memref<1x16xf32, #tpu.memory_space<vmem>>, %arg6: memref<16x128xbf16, #tpu.memory_space<vmem>>, %arg7: memref<1x128xf32, #tpu.memory_space<vmem>>, %arg8: memref<8x128xf32, #tpu.memory_space<vmem>>) attributes {dimension_semantics = [], scalar_prefetch = 0 : i64, scratch_operands = 0 : i64, tpu.core_type = #tpu.core_type<tc>} {
    %c0 = arith.constant 0 : index
    %c0_0 = arith.constant 0 : index
    %0 = vector.load %arg0[%c0, %c0_0] : memref<64x16xbf16, #tpu.memory_space<vmem>>, vector<64x16xbf16>
    %c0_1 = arith.constant 0 : index
    %c0_2 = arith.constant 0 : index
    %1 = vector.load %arg1[%c0_1, %c0_2] : memref<16x128xbf16, #tpu.memory_space<vmem>>, vector<16x128xbf16>
    %cst = arith.constant dense<0.000000e+00> : vector<64x128xf32>
    %2 = tpu.matmul %0, %1, %cst {dimension_numbers = #tpu.dot_dimension_numbers<[1], [0], [0], [1], [0, 0, 1, 1], [], []>} : vector<64x16xbf16>, vector<16x128xbf16>, vector<64x128xf32> -> vector<64x128xf32>
    %c0_3 = arith.constant 0 : index
    %c0_4 = arith.constant 0 : index
    %3 = vector.load %arg3[%c0_3, %c0_4] : memref<1x128xf32, #tpu.memory_space<vmem>>, vector<1x128xf32>
    %4 = vector.broadcast %3 : vector<1x128xf32> to vector<64x128xf32>
    %5 = arith.addf %2, %4 : vector<64x128xf32>
    %c0_5 = arith.constant 0 : index
    %c0_6 = arith.constant 0 : index
    %6 = vector.load %arg2[%c0_5, %c0_6] : memref<32x128xbf16, #tpu.memory_space<vmem>>, vector<32x128xbf16>
    %cst_7 = arith.constant 0.000000e+00 : f32
    %7 = vector.broadcast %cst_7 : f32 to vector<8x32xf32>
    %cst_8 = arith.constant 0.000000e+00 : f32
    %8 = vector.broadcast %cst_8 : f32 to vector<8x32xf32>
    %9 = vector.extract_strided_slice %5 {offsets = [0, 0], sizes = [8, 128], strides = [1, 1]} : vector<64x128xf32> to vector<8x128xf32>
    %10 = arith.truncf %7 : vector<8x32xf32> to vector<8x32xbf16>
    %cst_9 = arith.constant dense<0.000000e+00> : vector<8x128xf32>
    %11 = tpu.matmul %10, %6, %cst_9 {dimension_numbers = #tpu.dot_dimension_numbers<[1], [0], [0], [1], [0, 0, 1, 1], [], []>} : vector<8x32xbf16>, vector<32x128xbf16>, vector<8x128xf32> -> vector<8x128xf32>
    %12 = arith.addf %9, %11 : vector<8x128xf32>
    %13 = arith.negf %12 : vector<8x128xf32>
    %14 = math.exp %13 : vector<8x128xf32>
    %cst_10 = arith.constant 1.000000e+00 : f32
    %15 = vector.broadcast %cst_10 : f32 to vector<8x128xf32>
    %16 = arith.addf %15, %14 : vector<8x128xf32>
    %17 = arith.divf %15, %16 : vector<8x128xf32>
    %18 = vector.extract_strided_slice %17 {offsets = [0, 0], sizes = [8, 32], strides = [1, 1]} : vector<8x128xf32> to vector<8x32xf32>
    %19 = vector.extract_strided_slice %17 {offsets = [0, 32], sizes = [8, 32], strides = [1, 1]} : vector<8x128xf32> to vector<8x32xf32>
    %20 = vector.extract_strided_slice %17 {offsets = [0, 64], sizes = [8, 32], strides = [1, 1]} : vector<8x128xf32> to vector<8x32xf32>
    %cst_11 = arith.constant 2.000000e+00 : f32
    %21 = vector.broadcast %cst_11 : f32 to vector<8x32xf32>
    %22 = arith.mulf %21, %20 : vector<8x32xf32>
    %cst_12 = arith.constant 1.000000e+00 : f32
    %23 = vector.broadcast %cst_12 : f32 to vector<8x32xf32>
    %24 = arith.subf %22, %23 : vector<8x32xf32>
    %25 = vector.extract_strided_slice %17 {offsets = [0, 96], sizes = [8, 32], strides = [1, 1]} : vector<8x128xf32> to vector<8x32xf32>
    %26 = arith.mulf %19, %8 : vector<8x32xf32>
    %27 = arith.mulf %18, %24 : vector<8x32xf32>
    %28 = arith.addf %26, %27 : vector<8x32xf32>
    %29 = math.tanh %28 : vector<8x32xf32>
    %30 = arith.mulf %25, %29 : vector<8x32xf32>
    %31 = vector.extract_strided_slice %5 {offsets = [8, 0], sizes = [8, 128], strides = [1, 1]} : vector<64x128xf32> to vector<8x128xf32>
    %32 = arith.truncf %30 : vector<8x32xf32> to vector<8x32xbf16>
    %cst_13 = arith.constant dense<0.000000e+00> : vector<8x128xf32>
    %33 = tpu.matmul %32, %6, %cst_13 {dimension_numbers = #tpu.dot_dimension_numbers<[1], [0], [0], [1], [0, 0, 1, 1], [], []>} : vector<8x32xbf16>, vector<32x128xbf16>, vector<8x128xf32> -> vector<8x128xf32>
    %34 = arith.addf %31, %33 : vector<8x128xf32>
    %35 = arith.negf %34 : vector<8x128xf32>
    %36 = math.exp %35 : vector<8x128xf32>
    %cst_14 = arith.constant 1.000000e+00 : f32
    %37 = vector.broadcast %cst_14 : f32 to vector<8x128xf32>
    %38 = arith.addf %37, %36 : vector<8x128xf32>
    %39 = arith.divf %37, %38 : vector<8x128xf32>
    %40 = vector.extract_strided_slice %39 {offsets = [0, 0], sizes = [8, 32], strides = [1, 1]} : vector<8x128xf32> to vector<8x32xf32>
    %41 = vector.extract_strided_slice %39 {offsets = [0, 32], sizes = [8, 32], strides = [1, 1]} : vector<8x128xf32> to vector<8x32xf32>
    %42 = vector.extract_strided_slice %39 {offsets = [0, 64], sizes = [8, 32], strides = [1, 1]} : vector<8x128xf32> to vector<8x32xf32>
    %cst_15 = arith.constant 2.000000e+00 : f32
    %43 = vector.broadcast %cst_15 : f32 to vector<8x32xf32>
    %44 = arith.mulf %43, %42 : vector<8x32xf32>
    %cst_16 = arith.constant 1.000000e+00 : f32
    %45 = vector.broadcast %cst_16 : f32 to vector<8x32xf32>
    %46 = arith.subf %44, %45 : vector<8x32xf32>
    %47 = vector.extract_strided_slice %39 {offsets = [0, 96], sizes = [8, 32], strides = [1, 1]} : vector<8x128xf32> to vector<8x32xf32>
    %48 = arith.mulf %41, %28 : vector<8x32xf32>
    %49 = arith.mulf %40, %46 : vector<8x32xf32>
    %50 = arith.addf %48, %49 : vector<8x32xf32>
    %51 = math.tanh %50 : vector<8x32xf32>
    %52 = arith.mulf %47, %51 : vector<8x32xf32>
    %53 = vector.extract_strided_slice %5 {offsets = [16, 0], sizes = [8, 128], strides = [1, 1]} : vector<64x128xf32> to vector<8x128xf32>
    %54 = arith.truncf %52 : vector<8x32xf32> to vector<8x32xbf16>
    %cst_17 = arith.constant dense<0.000000e+00> : vector<8x128xf32>
    %55 = tpu.matmul %54, %6, %cst_17 {dimension_numbers = #tpu.dot_dimension_numbers<[1], [0], [0], [1], [0, 0, 1, 1], [], []>} : vector<8x32xbf16>, vector<32x128xbf16>, vector<8x128xf32> -> vector<8x128xf32>
    %56 = arith.addf %53, %55 : vector<8x128xf32>
    %57 = arith.negf %56 : vector<8x128xf32>
    %58 = math.exp %57 : vector<8x128xf32>
    %cst_18 = arith.constant 1.000000e+00 : f32
    %59 = vector.broadcast %cst_18 : f32 to vector<8x128xf32>
    %60 = arith.addf %59, %58 : vector<8x128xf32>
    %61 = arith.divf %59, %60 : vector<8x128xf32>
    %62 = vector.extract_strided_slice %61 {offsets = [0, 0], sizes = [8, 32], strides = [1, 1]} : vector<8x128xf32> to vector<8x32xf32>
    %63 = vector.extract_strided_slice %61 {offsets = [0, 32], sizes = [8, 32], strides = [1, 1]} : vector<8x128xf32> to vector<8x32xf32>
    %64 = vector.extract_strided_slice %61 {offsets = [0, 64], sizes = [8, 32], strides = [1, 1]} : vector<8x128xf32> to vector<8x32xf32>
    %cst_19 = arith.constant 2.000000e+00 : f32
    %65 = vector.broadcast %cst_19 : f32 to vector<8x32xf32>
    %66 = arith.mulf %65, %64 : vector<8x32xf32>
    %cst_20 = arith.constant 1.000000e+00 : f32
    %67 = vector.broadcast %cst_20 : f32 to vector<8x32xf32>
    %68 = arith.subf %66, %67 : vector<8x32xf32>
    %69 = vector.extract_strided_slice %61 {offsets = [0, 96], sizes = [8, 32], strides = [1, 1]} : vector<8x128xf32> to vector<8x32xf32>
    %70 = arith.mulf %63, %50 : vector<8x32xf32>
    %71 = arith.mulf %62, %68 : vector<8x32xf32>
    %72 = arith.addf %70, %71 : vector<8x32xf32>
    %73 = math.tanh %72 : vector<8x32xf32>
    %74 = arith.mulf %69, %73 : vector<8x32xf32>
    %75 = vector.extract_strided_slice %5 {offsets = [24, 0], sizes = [8, 128], strides = [1, 1]} : vector<64x128xf32> to vector<8x128xf32>
    %76 = arith.truncf %74 : vector<8x32xf32> to vector<8x32xbf16>
    %cst_21 = arith.constant dense<0.000000e+00> : vector<8x128xf32>
    %77 = tpu.matmul %76, %6, %cst_21 {dimension_numbers = #tpu.dot_dimension_numbers<[1], [0], [0], [1], [0, 0, 1, 1], [], []>} : vector<8x32xbf16>, vector<32x128xbf16>, vector<8x128xf32> -> vector<8x128xf32>
    %78 = arith.addf %75, %77 : vector<8x128xf32>
    %79 = arith.negf %78 : vector<8x128xf32>
    %80 = math.exp %79 : vector<8x128xf32>
    %cst_22 = arith.constant 1.000000e+00 : f32
    %81 = vector.broadcast %cst_22 : f32 to vector<8x128xf32>
    %82 = arith.addf %81, %80 : vector<8x128xf32>
    %83 = arith.divf %81, %82 : vector<8x128xf32>
    %84 = vector.extract_strided_slice %83 {offsets = [0, 0], sizes = [8, 32], strides = [1, 1]} : vector<8x128xf32> to vector<8x32xf32>
    %85 = vector.extract_strided_slice %83 {offsets = [0, 32], sizes = [8, 32], strides = [1, 1]} : vector<8x128xf32> to vector<8x32xf32>
    %86 = vector.extract_strided_slice %83 {offsets = [0, 64], sizes = [8, 32], strides = [1, 1]} : vector<8x128xf32> to vector<8x32xf32>
    %cst_23 = arith.constant 2.000000e+00 : f32
    %87 = vector.broadcast %cst_23 : f32 to vector<8x32xf32>
    %88 = arith.mulf %87, %86 : vector<8x32xf32>
    %cst_24 = arith.constant 1.000000e+00 : f32
    %89 = vector.broadcast %cst_24 : f32 to vector<8x32xf32>
    %90 = arith.subf %88, %89 : vector<8x32xf32>
    %91 = vector.extract_strided_slice %83 {offsets = [0, 96], sizes = [8, 32], strides = [1, 1]} : vector<8x128xf32> to vector<8x32xf32>
    %92 = arith.mulf %85, %72 : vector<8x32xf32>
    %93 = arith.mulf %84, %90 : vector<8x32xf32>
    %94 = arith.addf %92, %93 : vector<8x32xf32>
    %95 = math.tanh %94 : vector<8x32xf32>
    %96 = arith.mulf %91, %95 : vector<8x32xf32>
    %97 = vector.extract_strided_slice %5 {offsets = [32, 0], sizes = [8, 128], strides = [1, 1]} : vector<64x128xf32> to vector<8x128xf32>
    %98 = arith.truncf %96 : vector<8x32xf32> to vector<8x32xbf16>
    %cst_25 = arith.constant dense<0.000000e+00> : vector<8x128xf32>
    %99 = tpu.matmul %98, %6, %cst_25 {dimension_numbers = #tpu.dot_dimension_numbers<[1], [0], [0], [1], [0, 0, 1, 1], [], []>} : vector<8x32xbf16>, vector<32x128xbf16>, vector<8x128xf32> -> vector<8x128xf32>
    %100 = arith.addf %97, %99 : vector<8x128xf32>
    %101 = arith.negf %100 : vector<8x128xf32>
    %102 = math.exp %101 : vector<8x128xf32>
    %cst_26 = arith.constant 1.000000e+00 : f32
    %103 = vector.broadcast %cst_26 : f32 to vector<8x128xf32>
    %104 = arith.addf %103, %102 : vector<8x128xf32>
    %105 = arith.divf %103, %104 : vector<8x128xf32>
    %106 = vector.extract_strided_slice %105 {offsets = [0, 0], sizes = [8, 32], strides = [1, 1]} : vector<8x128xf32> to vector<8x32xf32>
    %107 = vector.extract_strided_slice %105 {offsets = [0, 32], sizes = [8, 32], strides = [1, 1]} : vector<8x128xf32> to vector<8x32xf32>
    %108 = vector.extract_strided_slice %105 {offsets = [0, 64], sizes = [8, 32], strides = [1, 1]} : vector<8x128xf32> to vector<8x32xf32>
    %cst_27 = arith.constant 2.000000e+00 : f32
    %109 = vector.broadcast %cst_27 : f32 to vector<8x32xf32>
    %110 = arith.mulf %109, %108 : vector<8x32xf32>
    %cst_28 = arith.constant 1.000000e+00 : f32
    %111 = vector.broadcast %cst_28 : f32 to vector<8x32xf32>
    %112 = arith.subf %110, %111 : vector<8x32xf32>
    %113 = vector.extract_strided_slice %105 {offsets = [0, 96], sizes = [8, 32], strides = [1, 1]} : vector<8x128xf32> to vector<8x32xf32>
    %114 = arith.mulf %107, %94 : vector<8x32xf32>
    %115 = arith.mulf %106, %112 : vector<8x32xf32>
    %116 = arith.addf %114, %115 : vector<8x32xf32>
    %117 = math.tanh %116 : vector<8x32xf32>
    %118 = arith.mulf %113, %117 : vector<8x32xf32>
    %119 = vector.extract_strided_slice %5 {offsets = [40, 0], sizes = [8, 128], strides = [1, 1]} : vector<64x128xf32> to vector<8x128xf32>
    %120 = arith.truncf %118 : vector<8x32xf32> to vector<8x32xbf16>
    %cst_29 = arith.constant dense<0.000000e+00> : vector<8x128xf32>
    %121 = tpu.matmul %120, %6, %cst_29 {dimension_numbers = #tpu.dot_dimension_numbers<[1], [0], [0], [1], [0, 0, 1, 1], [], []>} : vector<8x32xbf16>, vector<32x128xbf16>, vector<8x128xf32> -> vector<8x128xf32>
    %122 = arith.addf %119, %121 : vector<8x128xf32>
    %123 = arith.negf %122 : vector<8x128xf32>
    %124 = math.exp %123 : vector<8x128xf32>
    %cst_30 = arith.constant 1.000000e+00 : f32
    %125 = vector.broadcast %cst_30 : f32 to vector<8x128xf32>
    %126 = arith.addf %125, %124 : vector<8x128xf32>
    %127 = arith.divf %125, %126 : vector<8x128xf32>
    %128 = vector.extract_strided_slice %127 {offsets = [0, 0], sizes = [8, 32], strides = [1, 1]} : vector<8x128xf32> to vector<8x32xf32>
    %129 = vector.extract_strided_slice %127 {offsets = [0, 32], sizes = [8, 32], strides = [1, 1]} : vector<8x128xf32> to vector<8x32xf32>
    %130 = vector.extract_strided_slice %127 {offsets = [0, 64], sizes = [8, 32], strides = [1, 1]} : vector<8x128xf32> to vector<8x32xf32>
    %cst_31 = arith.constant 2.000000e+00 : f32
    %131 = vector.broadcast %cst_31 : f32 to vector<8x32xf32>
    %132 = arith.mulf %131, %130 : vector<8x32xf32>
    %cst_32 = arith.constant 1.000000e+00 : f32
    %133 = vector.broadcast %cst_32 : f32 to vector<8x32xf32>
    %134 = arith.subf %132, %133 : vector<8x32xf32>
    %135 = vector.extract_strided_slice %127 {offsets = [0, 96], sizes = [8, 32], strides = [1, 1]} : vector<8x128xf32> to vector<8x32xf32>
    %136 = arith.mulf %129, %116 : vector<8x32xf32>
    %137 = arith.mulf %128, %134 : vector<8x32xf32>
    %138 = arith.addf %136, %137 : vector<8x32xf32>
    %139 = math.tanh %138 : vector<8x32xf32>
    %140 = arith.mulf %135, %139 : vector<8x32xf32>
    %141 = vector.extract_strided_slice %5 {offsets = [48, 0], sizes = [8, 128], strides = [1, 1]} : vector<64x128xf32> to vector<8x128xf32>
    %142 = arith.truncf %140 : vector<8x32xf32> to vector<8x32xbf16>
    %cst_33 = arith.constant dense<0.000000e+00> : vector<8x128xf32>
    %143 = tpu.matmul %142, %6, %cst_33 {dimension_numbers = #tpu.dot_dimension_numbers<[1], [0], [0], [1], [0, 0, 1, 1], [], []>} : vector<8x32xbf16>, vector<32x128xbf16>, vector<8x128xf32> -> vector<8x128xf32>
    %144 = arith.addf %141, %143 : vector<8x128xf32>
    %145 = arith.negf %144 : vector<8x128xf32>
    %146 = math.exp %145 : vector<8x128xf32>
    %cst_34 = arith.constant 1.000000e+00 : f32
    %147 = vector.broadcast %cst_34 : f32 to vector<8x128xf32>
    %148 = arith.addf %147, %146 : vector<8x128xf32>
    %149 = arith.divf %147, %148 : vector<8x128xf32>
    %150 = vector.extract_strided_slice %149 {offsets = [0, 0], sizes = [8, 32], strides = [1, 1]} : vector<8x128xf32> to vector<8x32xf32>
    %151 = vector.extract_strided_slice %149 {offsets = [0, 32], sizes = [8, 32], strides = [1, 1]} : vector<8x128xf32> to vector<8x32xf32>
    %152 = vector.extract_strided_slice %149 {offsets = [0, 64], sizes = [8, 32], strides = [1, 1]} : vector<8x128xf32> to vector<8x32xf32>
    %cst_35 = arith.constant 2.000000e+00 : f32
    %153 = vector.broadcast %cst_35 : f32 to vector<8x32xf32>
    %154 = arith.mulf %153, %152 : vector<8x32xf32>
    %cst_36 = arith.constant 1.000000e+00 : f32
    %155 = vector.broadcast %cst_36 : f32 to vector<8x32xf32>
    %156 = arith.subf %154, %155 : vector<8x32xf32>
    %157 = vector.extract_strided_slice %149 {offsets = [0, 96], sizes = [8, 32], strides = [1, 1]} : vector<8x128xf32> to vector<8x32xf32>
    %158 = arith.mulf %151, %138 : vector<8x32xf32>
    %159 = arith.mulf %150, %156 : vector<8x32xf32>
    %160 = arith.addf %158, %159 : vector<8x32xf32>
    %161 = math.tanh %160 : vector<8x32xf32>
    %162 = arith.mulf %157, %161 : vector<8x32xf32>
    %163 = vector.extract_strided_slice %5 {offsets = [56, 0], sizes = [8, 128], strides = [1, 1]} : vector<64x128xf32> to vector<8x128xf32>
    %164 = arith.truncf %162 : vector<8x32xf32> to vector<8x32xbf16>
    %cst_37 = arith.constant dense<0.000000e+00> : vector<8x128xf32>
    %165 = tpu.matmul %164, %6, %cst_37 {dimension_numbers = #tpu.dot_dimension_numbers<[1], [0], [0], [1], [0, 0, 1, 1], [], []>} : vector<8x32xbf16>, vector<32x128xbf16>, vector<8x128xf32> -> vector<8x128xf32>
    %166 = arith.addf %163, %165 : vector<8x128xf32>
    %167 = arith.negf %166 : vector<8x128xf32>
    %168 = math.exp %167 : vector<8x128xf32>
    %cst_38 = arith.constant 1.000000e+00 : f32
    %169 = vector.broadcast %cst_38 : f32 to vector<8x128xf32>
    %170 = arith.addf %169, %168 : vector<8x128xf32>
    %171 = arith.divf %169, %170 : vector<8x128xf32>
    %172 = vector.extract_strided_slice %171 {offsets = [0, 0], sizes = [8, 32], strides = [1, 1]} : vector<8x128xf32> to vector<8x32xf32>
    %173 = vector.extract_strided_slice %171 {offsets = [0, 32], sizes = [8, 32], strides = [1, 1]} : vector<8x128xf32> to vector<8x32xf32>
    %174 = vector.extract_strided_slice %171 {offsets = [0, 64], sizes = [8, 32], strides = [1, 1]} : vector<8x128xf32> to vector<8x32xf32>
    %cst_39 = arith.constant 2.000000e+00 : f32
    %175 = vector.broadcast %cst_39 : f32 to vector<8x32xf32>
    %176 = arith.mulf %175, %174 : vector<8x32xf32>
    %cst_40 = arith.constant 1.000000e+00 : f32
    %177 = vector.broadcast %cst_40 : f32 to vector<8x32xf32>
    %178 = arith.subf %176, %177 : vector<8x32xf32>
    %179 = vector.extract_strided_slice %171 {offsets = [0, 96], sizes = [8, 32], strides = [1, 1]} : vector<8x128xf32> to vector<8x32xf32>
    %180 = arith.mulf %173, %160 : vector<8x32xf32>
    %181 = arith.mulf %172, %178 : vector<8x32xf32>
    %182 = arith.addf %180, %181 : vector<8x32xf32>
    %183 = math.tanh %182 : vector<8x32xf32>
    %184 = arith.mulf %179, %183 : vector<8x32xf32>
    %185 = arith.truncf %184 : vector<8x32xf32> to vector<8x32xbf16>
    %c0_41 = arith.constant 0 : index
    %c0_42 = arith.constant 0 : index
    %186 = vector.load %arg4[%c0_41, %c0_42] : memref<32x16xbf16, #tpu.memory_space<vmem>>, vector<32x16xbf16>
    %cst_43 = arith.constant dense<0.000000e+00> : vector<8x16xf32>
    %187 = tpu.matmul %185, %186, %cst_43 {dimension_numbers = #tpu.dot_dimension_numbers<[1], [0], [0], [1], [0, 0, 1, 1], [], []>} : vector<8x32xbf16>, vector<32x16xbf16>, vector<8x16xf32> -> vector<8x16xf32>
    %c0_44 = arith.constant 0 : index
    %c0_45 = arith.constant 0 : index
    %188 = vector.load %arg5[%c0_44, %c0_45] : memref<1x16xf32, #tpu.memory_space<vmem>>, vector<1x16xf32>
    %189 = vector.broadcast %188 : vector<1x16xf32> to vector<8x16xf32>
    %190 = arith.addf %187, %189 : vector<8x16xf32>
    %cst_46 = arith.constant 0.000000e+00 : f32
    %191 = vector.broadcast %cst_46 : f32 to vector<8x16xf32>
    %192 = arith.maximumf %190, %191 : vector<8x16xf32>
    %193 = arith.truncf %192 : vector<8x16xf32> to vector<8x16xbf16>
    %c0_47 = arith.constant 0 : index
    %c0_48 = arith.constant 0 : index
    %194 = vector.load %arg6[%c0_47, %c0_48] : memref<16x128xbf16, #tpu.memory_space<vmem>>, vector<16x128xbf16>
    %cst_49 = arith.constant dense<0.000000e+00> : vector<8x128xf32>
    %195 = tpu.matmul %193, %194, %cst_49 {dimension_numbers = #tpu.dot_dimension_numbers<[1], [0], [0], [1], [0, 0, 1, 1], [], []>} : vector<8x16xbf16>, vector<16x128xbf16>, vector<8x128xf32> -> vector<8x128xf32>
    %c0_50 = arith.constant 0 : index
    %c0_51 = arith.constant 0 : index
    %196 = vector.load %arg7[%c0_50, %c0_51] : memref<1x128xf32, #tpu.memory_space<vmem>>, vector<1x128xf32>
    %197 = vector.broadcast %196 : vector<1x128xf32> to vector<8x128xf32>
    %198 = arith.addf %195, %197 : vector<8x128xf32>
    %c0_52 = arith.constant 0 : index
    %c0_53 = arith.constant 0 : index
    %199 = vector.load %arg8[%c0_52, %c0_53] : memref<8x128xf32, #tpu.memory_space<vmem>>, vector<8x128xf32>
    tpu.vector_store %arg8[%c0_52, %c0_53], %198 {strides = array<i32>} : memref<8x128xf32, #tpu.memory_space<vmem>>, vector<8x128xf32>,
    return
  }
}

</mosaic_0001>

<llo_original>
// kernel: cs_classifier_lstm_forward.1
$region0: #{cs_classifier_lstm_forward.1}
  #allocation0 [shape = 'u32[]', space=smem, size = 0x4, offset = 0x4, fixed_abs, tag = 'smem constant byte address 0x4 - core index']
  #allocation1 [shape = 'u32[144,128]{1,0:T(1,128)}', space=vmem, size = 0x12000, scoped, tag = 'internal scratch']
  %s0 = inlined_call_operand.vmem [shape: bf16[64,16], index: 0, kind: input, shape index: {}]
  %s1 = inlined_call_operand.vmem [shape: bf16[16,128], index: 1, kind: input, shape index: {}]
  %s2 = inlined_call_operand.vmem [shape: bf16[32,128], index: 2, kind: input, shape index: {}]
  %s3 = inlined_call_operand.vmem [shape: f32[1,128], index: 3, kind: input, shape index: {}]
  %s4 = inlined_call_operand.vmem [shape: bf16[32,16], index: 4, kind: input, shape index: {}]
  %s5 = inlined_call_operand.vmem [shape: f32[1,16], index: 5, kind: input, shape index: {}]
  %s6 = inlined_call_operand.vmem [shape: bf16[16,128], index: 6, kind: input, shape index: {}]
  %s7 = inlined_call_operand.vmem [shape: f32[1,128], index: 7, kind: input, shape index: {}]
  %s8 = inlined_call_operand.vmem [shape: f32[8,128], index: 8, kind: output, shape index: {}]
  %s9 = sld [smem:[#allocation0]]
  $region42: #{cs_classifier_lstm_forward.1} parent=0
    _
  %s11 = ssub.s32 1, %s9
  %s12 = scalar_select 0, %s11, %s9
  // Predicated region
  $region2: #{cs_classifier_lstm_forward.1} parent=0 // pred_check
    _
  $region3: #{cs_classifier_lstm_forward.1} parent=0 // pred_check_branch
    %14 = sbr.rel (0) target = $region5
  $region4: #{cs_classifier_lstm_forward.1} parent=0 // pred_region
    _
  $region5: #{cs_classifier_lstm_forward.1} parent=0 // pred_fallthru
    _
  // Predicated region
  $region6: #{cs_classifier_lstm_forward.1} parent=0 // pred_check
    _
  $region7: #{cs_classifier_lstm_forward.1} parent=0 // pred_check_branch
    %16 = sbr.rel (0) target = $region9
  $region8: #{cs_classifier_lstm_forward.1} parent=0 // pred_region
    _
  $region9: #{cs_classifier_lstm_forward.1} parent=0 // pred_fallthru
    _
  // Predicated region
  $region10: #{cs_classifier_lstm_forward.1} parent=0 // pred_check
    _
  $region11: #{cs_classifier_lstm_forward.1} parent=0 // pred_check_branch
    %18 = sbr.rel (0) target = $region13
  $region12: #{cs_classifier_lstm_forward.1} parent=0 // pred_region
    _
  $region13: #{cs_classifier_lstm_forward.1} parent=0 // pred_fallthru
    _
  // Predicated region
  $region14: #{cs_classifier_lstm_forward.1} parent=0 // pred_check
    _
  $region15: #{cs_classifier_lstm_forward.1} parent=0 // pred_check_branch
    %20 = sbr.rel (0) target = $region17
  $region16: #{cs_classifier_lstm_forward.1} parent=0 // pred_region
    _
  $region17: #{cs_classifier_lstm_forward.1} parent=0 // pred_fallthru
    _
  // Predicated region
  $region18: #{cs_classifier_lstm_forward.1} parent=0 // pred_check
    _
  $region19: #{cs_classifier_lstm_forward.1} parent=0 // pred_check_branch
    %22 = sbr.rel (0) target = $region21
  $region20: #{cs_classifier_lstm_forward.1} parent=0 // pred_region
    _
  $region21: #{cs_classifier_lstm_forward.1} parent=0 // pred_fallthru
    _
  // Predicated region
  $region22: #{cs_classifier_lstm_forward.1} parent=0 // pred_check
    _
  $region23: #{cs_classifier_lstm_forward.1} parent=0 // pred_check_branch
    %24 = sbr.rel (0) target = $region25
  $region24: #{cs_classifier_lstm_forward.1} parent=0 // pred_region
    _
  $region25: #{cs_classifier_lstm_forward.1} parent=0 // pred_fallthru
    _
  // Predicated region
  $region26: #{cs_classifier_lstm_forward.1} parent=0 // pred_check
    _
  $region27: #{cs_classifier_lstm_forward.1} parent=0 // pred_check_branch
    %26 = sbr.rel (0) target = $region29
  $region28: #{cs_classifier_lstm_forward.1} parent=0 // pred_region
    _
  $region29: #{cs_classifier_lstm_forward.1} parent=0 // pred_fallthru
    _
  // Predicated region
  $region30: #{cs_classifier_lstm_forward.1} parent=0 // pred_check
    _
  $region31: #{cs_classifier_lstm_forward.1} parent=0 // pred_check_branch
    %28 = sbr.rel (0) target = $region33
  $region32: #{cs_classifier_lstm_forward.1} parent=0 // pred_region
    _
  $region33: #{cs_classifier_lstm_forward.1} parent=0 // pred_fallthru
    _
  %v30 = vld [vmem:[%s0] sm:$0xf]
  %v31 = vld [vmem:[%s0 + $0x4] sm:$0xf]
  %v32 = vld [vmem:[%s0 + $0x8] sm:$0xf]
  %v33 = vld [vmem:[%s0 + $0xc] sm:$0xf]
  %v34 = vld [vmem:[%s0 + $0x10] sm:$0xf]
  %v35 = vld [vmem:[%s0 + $0x14] sm:$0xf]
  %v36 = vld [vmem:[%s0 + $0x18] sm:$0xf]
  %v37 = vld [vmem:[%s0 + $0x1c] sm:$0xf]
  %v38 = vld [vmem:[%s1] sm:$0xf]
  %v39 = vld [vmem:[%s1 + $0x4] sm:$0xf]
  %v40 = vld [vmem:[%s3] sm:$0x1]
  %v42 = vlaneseq
  %v43 = vshrl.u32 %v42, 7
  %v44 = vsub.s32 0, %v43
  %v45 = vrot.slane %v40, %v44
  %v55 = vunpack.c.l.b16 %v30
  %v56 = vunpack.c.l.b16 %v31
  %v57 = vunpack.c.l.b16 %v32
  %v58 = vunpack.c.l.b16 %v33
  %v59 = vunpack.c.l.b16 %v34
  %v60 = vunpack.c.l.b16 %v35
  %v61 = vunpack.c.l.b16 %v36
  %v62 = vunpack.c.l.b16 %v37
  %v63 = vpack.c.b16 %v56, %v55
  %v64 = vpack.c.b16 %v58, %v57
  %v65 = vpack.c.b16 %v60, %v59
  %v66 = vpack.c.b16 %v62, %v61
  %v69 = vunpack.c.l.b16 %v38
  %v70 = vunpack.c.l.b16 %v39
  %v71 = vpack.c.b16 %v70, %v69
  %vm73 = vcmask 130048
  %v75 = vsel %vm73, %v63, 0
  %v78 = vsel %vm73, %v64, 0
  %v81 = vsel %vm73, %v65, 0
  %v84 = vsel %vm73, %v66, 0
  %86 = vmatprep.subr.bf16.mxu0 0
  %87 = vmatpush1.bf16.msra.mxu0 0
  %88 = vmatprep.subr.bf16.mxu0 0
  %89 = vmatpush1.bf16.msra.mxu0 0
  %90 = vmatprep.subr.bf16.mxu0 0
  %91 = vmatpush1.bf16.msra.mxu0 0
  %92 = vmatprep.subr.bf16.mxu0 0
  %93 = vmatpush1.bf16.msra.mxu0 0
  %94 = vmatprep.subr.bf16.mxu0 0
  %95 = vmatpush1.bf16.msra.mxu0 0
  %96 = vmatprep.subr.bf16.mxu0 0
  %97 = vmatpush1.bf16.msra.mxu0 0
  %98 = vmatprep.subr.bf16.mxu0 0
  %99 = vmatpush1.bf16.msra.mxu0 0
  %100 = vmatprep.subr.bf16.mxu0 0
  %101 = vmatpush1.bf16.msra.mxu0 %v71
  %102 = vmatprep.subr.bf16.mxu0 0
  %103 = vmatpush2.bf16.msra.mxu0 0
  %104 = vmatprep.subr.bf16.mxu0 0
  %105 = vmatpush2.bf16.msra.mxu0 0
  %106 = vmatprep.subr.bf16.mxu0 0
  %107 = vmatpush2.bf16.msra.mxu0 0
  %108 = vmatprep.subr.bf16.mxu0 0
  %109 = vmatpush2.bf16.msra.mxu0 0
  %110 = vmatprep.subr.bf16.mxu0 0
  %111 = vmatpush2.bf16.msra.mxu0 0
  %112 = vmatprep.subr.bf16.mxu0 0
  %113 = vmatpush2.bf16.msra.mxu0 0
  %114 = vmatprep.subr.bf16.mxu0 0
  %115 = vmatpush2.bf16.msra.mxu0 0
  %116 = vmatprep.subr.bf16.mxu0 0
  %117 = vmatpush2.bf16.msra.mxu0 0
  %118 = vmatprep.mubr.bf16.mxu0 0
  %119 = vmatmul.mubr.bf16.gmra.mxu0 %v75
  %v120 = vpop.f32.mrf.mxu0
  %v121 = vadd.f32 %v45, %v120
  %v122 = vpop.f32.mrf.mxu0
  %v123 = vpop.f32.mrf.mxu0
  %v124 = vadd.f32 %v45, %v123
  %v125 = vpop.f32.mrf.mxu0
  %126 = vmatprep.mubr.bf16.mxu0 0
  %127 = vmatmul.mubr.bf16.gmra.mxu0 %v78
  %v128 = vpop.f32.mrf.mxu0
  %v129 = vadd.f32 %v45, %v128
  %v130 = vpop.f32.mrf.mxu0
  %v131 = vpop.f32.mrf.mxu0
  %v132 = vadd.f32 %v45, %v131
  %v133 = vpop.f32.mrf.mxu0
  %134 = vmatprep.mubr.bf16.mxu0 0
  %135 = vmatmul.mubr.bf16.gmra.mxu0 %v81
  %v136 = vpop.f32.mrf.mxu0
  %v137 = vadd.f32 %v45, %v136
  %v138 = vpop.f32.mrf.mxu0
  %v139 = vpop.f32.mrf.mxu0
  %v140 = vadd.f32 %v45, %v139
  %v141 = vpop.f32.mrf.mxu0
  %142 = vmatprep.mubr.bf16.mxu0 0
  %143 = vmatmul.mubr.bf16.gmra.mxu0 %v84
  %v144 = vpop.f32.mrf.mxu0
  %v145 = vadd.f32 %v45, %v144
  %v146 = vpop.f32.mrf.mxu0
  %v147 = vpop.f32.mrf.mxu0
  %v148 = vadd.f32 %v45, %v147
  %v149 = vpop.f32.mrf.mxu0
  %150 = vdwg.mxu0
  %v151 = vld [vmem:[%s2] sm:$0xf]
  %v152 = vld [vmem:[%s2 + $0x4] sm:$0xf]
  %v153 = vld [vmem:[%s2 + $0x8] sm:$0xf]
  %v154 = vld [vmem:[%s2 + $0xc] sm:$0xf]
  %v159 = vunpack.c.l.b16 %v151
  %v160 = vunpack.c.l.b16 %v152
  %v161 = vunpack.c.l.b16 %v153
  %v162 = vunpack.c.l.b16 %v154
  %v163 = vpack.c.b16 %v160, %v159
  %v164 = vpack.c.b16 %v162, %v161
  %vm167 = vcmask 261120
  %v169 = vsel %vm167, 0, 0
  %171 = vmatprep.subr.bf16.mxu0 0
  %172 = vmatpush1.bf16.msra.mxu0 0
  %173 = vmatprep.subr.bf16.mxu0 0
  %174 = vmatpush1.bf16.msra.mxu0 0
  %175 = vmatprep.subr.bf16.mxu0 0
  %176 = vmatpush1.bf16.msra.mxu0 0
  %177 = vmatprep.subr.bf16.mxu0 0
  %178 = vmatpush1.bf16.msra.mxu0 0
  %179 = vmatprep.subr.bf16.mxu0 0
  %180 = vmatpush1.bf16.msra.mxu0 0
  %181 = vmatprep.subr.bf16.mxu0 0
  %182 = vmatpush1.bf16.msra.mxu0 0
  %183 = vmatprep.subr.bf16.mxu0 0
  %184 = vmatpush1.bf16.msra.mxu0 %v164
  %185 = vmatprep.subr.bf16.mxu0 0
  %186 = vmatpush1.bf16.msra.mxu0 %v163
  %187 = vmatprep.subr.bf16.mxu0 0
  %188 = vmatpush2.bf16.msra.mxu0 0
  %189 = vmatprep.subr.bf16.mxu0 0
  %190 = vmatpush2.bf16.msra.mxu0 0
  %191 = vmatprep.subr.bf16.mxu0 0
  %192 = vmatpush2.bf16.msra.mxu0 0
  %193 = vmatprep.subr.bf16.mxu0 0
  %194 = vmatpush2.bf16.msra.mxu0 0
  %195 = vmatprep.subr.bf16.mxu0 0
  %196 = vmatpush2.bf16.msra.mxu0 0
  %197 = vmatprep.subr.bf16.mxu0 0
  %198 = vmatpush2.bf16.msra.mxu0 0
  %199 = vmatprep.subr.bf16.mxu0 0
  %200 = vmatpush2.bf16.msra.mxu0 0
  %201 = vmatprep.subr.bf16.mxu0 0
  %202 = vmatpush2.bf16.msra.mxu0 0
  %203 = vmatprep.mubr.bf16.mxu0 0
  %204 = vmatmul.mubr.bf16.gmra.mxu0 %v169
  %v205 = vpop.f32.mrf.mxu0
  %v206 = vadd.f32 0.0, %v205
  %v207 = vpop.f32.mrf.mxu0
  %v208 = vpop.f32.mrf.mxu0
  %v209 = vpop.f32.mrf.mxu0
  %210 = vdwg.mxu0
  %v211 = vadd.f32 %v121, %v206
  %v212 = vxor.u32 %v211, 2147483648
  %v213 = vmul.f32 %v212, 1.442695
  %v214 = vpow.pop %v213
  %v215 = vadd.f32 %v214, 1.0
  %v216 = vrcp.pop %v215
  %v217 = vmul.f32 1.0, %v216
  %v218 = vmul.f32 %v217, 2.0
  %v219 = vsub.f32 %v218, 1.0
  %v220 = vmul.f32 %v217, 0.0
  %222 = vrot.lane.b32.xlu0 %v219, 64
  %v223 = vpop.permute.xlu0 %222
  %v225 = vmul.f32 %v217, %v223
  %227 = vrot.lane.b32.xlu0 %v225, 32
  %v228 = vpop.permute.xlu0 %227
  %v230 = vadd.f32 %v220, %v228
  %v231 = vtanh.pop %v230
  %233 = vrot.lane.b32.xlu0 %v231, 64
  %v234 = vpop.permute.xlu0 %233
  %v236 = vmul.f32 %v217, %v234
  %v237 = vpack.c.bf16 %v236, %v236
  %239 = vrot.lane.b32.xlu0 %v237, 32
  %v240 = vpop.permute.xlu0 %239
  %v242 = vsel %vm167, %v240, 0
  %244 = vmatprep.subr.bf16.mxu0 0
  %245 = vmatpush1.bf16.msra.mxu0 0
  %246 = vmatprep.subr.bf16.mxu0 0
  %247 = vmatpush1.bf16.msra.mxu0 0
  %248 = vmatprep.subr.bf16.mxu0 0
  %249 = vmatpush1.bf16.msra.mxu0 0
  %250 = vmatprep.subr.bf16.mxu0 0
  %251 = vmatpush1.bf16.msra.mxu0 0
  %252 = vmatprep.subr.bf16.mxu0 0
  %253 = vmatpush1.bf16.msra.mxu0 0
  %254 = vmatprep.subr.bf16.mxu0 0
  %255 = vmatpush1.bf16.msra.mxu0 0
  %256 = vmatprep.subr.bf16.mxu0 0
  %257 = vmatpush1.bf16.msra.mxu0 %v164
  %258 = vmatprep.subr.bf16.mxu0 0
  %259 = vmatpush1.bf16.msra.mxu0 %v163
  %260 = vmatprep.subr.bf16.mxu0 0
  %261 = vmatpush2.bf16.msra.mxu0 0
  %262 = vmatprep.subr.bf16.mxu0 0
  %263 = vmatpush2.bf16.msra.mxu0 0
  %264 = vmatprep.subr.bf16.mxu0 0
  %265 = vmatpush2.bf16.msra.mxu0 0
  %266 = vmatprep.subr.bf16.mxu0 0
  %267 = vmatpush2.bf16.msra.mxu0 0
  %268 = vmatprep.subr.bf16.mxu0 0
  %269 = vmatpush2.bf16.msra.mxu0 0
  %270 = vmatprep.subr.bf16.mxu0 0
  %271 = vmatpush2.bf16.msra.mxu0 0
  %272 = vmatprep.subr.bf16.mxu0 0
  %273 = vmatpush2.bf16.msra.mxu0 0
  %274 = vmatprep.subr.bf16.mxu0 0
  %275 = vmatpush2.bf16.msra.mxu0 0
  %276 = vmatprep.mubr.bf16.mxu0 0
  %277 = vmatmul.mubr.bf16.gmra.mxu0 %v242
  %v278 = vpop.f32.mrf.mxu0
  %v279 = vadd.f32 0.0, %v278
  %v280 = vpop.f32.mrf.mxu0
  %v281 = vpop.f32.mrf.mxu0
  %v282 = vpop.f32.mrf.mxu0
  %283 = vdwg.mxu0
  %v284 = vadd.f32 %v124, %v279
  %v285 = vxor.u32 %v284, 2147483648
  %v286 = vmul.f32 %v285, 1.442695
  %v287 = vpow.pop %v286
  %v288 = vadd.f32 %v287, 1.0
  %v289 = vrcp.pop %v288
  %v290 = vmul.f32 1.0, %v289
  %v291 = vmul.f32 %v290, 2.0
  %v292 = vsub.f32 %v291, 1.0
  %v293 = vmul.f32 %v290, %v230
  %295 = vrot.lane.b32.xlu0 %v292, 64
  %v296 = vpop.permute.xlu0 %295
  %v298 = vmul.f32 %v290, %v296
  %300 = vrot.lane.b32.xlu0 %v298, 32
  %v301 = vpop.permute.xlu0 %300
  %v303 = vadd.f32 %v293, %v301
  %v304 = vtanh.pop %v303
  %306 = vrot.lane.b32.xlu0 %v304, 64
  %v307 = vpop.permute.xlu0 %306
  %v309 = vmul.f32 %v290, %v307
  %v310 = vpack.c.bf16 %v309, %v309
  %312 = vrot.lane.b32.xlu0 %v310, 32
  %v313 = vpop.permute.xlu0 %312
  %v315 = vsel %vm167, %v313, 0
  %317 = vmatprep.subr.bf16.mxu0 0
  %318 = vmatpush1.bf16.msra.mxu0 0
  %319 = vmatprep.subr.bf16.mxu0 0
  %320 = vmatpush1.bf16.msra.mxu0 0
  %321 = vmatprep.subr.bf16.mxu0 0
  %322 = vmatpush1.bf16.msra.mxu0 0
  %323 = vmatprep.subr.bf16.mxu0 0
  %324 = vmatpush1.bf16.msra.mxu0 0
  %325 = vmatprep.subr.bf16.mxu0 0
  %326 = vmatpush1.bf16.msra.mxu0 0
  %327 = vmatprep.subr.bf16.mxu0 0
  %328 = vmatpush1.bf16.msra.mxu0 0
  %329 = vmatprep.subr.bf16.mxu0 0
  %330 = vmatpush1.bf16.msra.mxu0 %v164
  %331 = vmatprep.subr.bf16.mxu0 0
  %332 = vmatpush1.bf16.msra.mxu0 %v163
  %333 = vmatprep.subr.bf16.mxu0 0
  %334 = vmatpush2.bf16.msra.mxu0 0
  %335 = vmatprep.subr.bf16.mxu0 0
  %336 = vmatpush2.bf16.msra.mxu0 0
  %337 = vmatprep.subr.bf16.mxu0 0
  %338 = vmatpush2.bf16.msra.mxu0 0
  %339 = vmatprep.subr.bf16.mxu0 0
  %340 = vmatpush2.bf16.msra.mxu0 0
  %341 = vmatprep.subr.bf16.mxu0 0
  %342 = vmatpush2.bf16.msra.mxu0 0
  %343 = vmatprep.subr.bf16.mxu0 0
  %344 = vmatpush2.bf16.msra.mxu0 0
  %345 = vmatprep.subr.bf16.mxu0 0
  %346 = vmatpush2.bf16.msra.mxu0 0
  %347 = vmatprep.subr.bf16.mxu0 0
  %348 = vmatpush2.bf16.msra.mxu0 0
  %349 = vmatprep.mubr.bf16.mxu0 0
  %350 = vmatmul.mubr.bf16.gmra.mxu0 %v315
  %v351 = vpop.f32.mrf.mxu0
  %v352 = vadd.f32 0.0, %v351
  %v353 = vpop.f32.mrf.mxu0
  %v354 = vpop.f32.mrf.mxu0
  %v355 = vpop.f32.mrf.mxu0
  %356 = vdwg.mxu0
  %v357 = vadd.f32 %v129, %v352
  %v358 = vxor.u32 %v357, 2147483648
  %v359 = vmul.f32 %v358, 1.442695
  %v360 = vpow.pop %v359
  %v361 = vadd.f32 %v360, 1.0
  %v362 = vrcp.pop %v361
  %v363 = vmul.f32 1.0, %v362
  %v364 = vmul.f32 %v363, 2.0
  %v365 = vsub.f32 %v364, 1.0
  %v366 = vmul.f32 %v363, %v303
  %368 = vrot.lane.b32.xlu0 %v365, 64
  %v369 = vpop.permute.xlu0 %368
  %v371 = vmul.f32 %v363, %v369
  %373 = vrot.lane.b32.xlu0 %v371, 32
  %v374 = vpop.permute.xlu0 %373
  %v376 = vadd.f32 %v366, %v374
  %v377 = vtanh.pop %v376
  %379 = vrot.lane.b32.xlu0 %v377, 64
  %v380 = vpop.permute.xlu0 %379
  %v382 = vmul.f32 %v363, %v380
  %v383 = vpack.c.bf16 %v382, %v382
  %385 = vrot.lane.b32.xlu0 %v383, 32
  %v386 = vpop.permute.xlu0 %385
  %v388 = vsel %vm167, %v386, 0
  %390 = vmatprep.subr.bf16.mxu0 0
  %391 = vmatpush1.bf16.msra.mxu0 0
  %392 = vmatprep.subr.bf16.mxu0 0
  %393 = vmatpush1.bf16.msra.mxu0 0
  %394 = vmatprep.subr.bf16.mxu0 0
  %395 = vmatpush1.bf16.msra.mxu0 0
  %396 = vmatprep.subr.bf16.mxu0 0
  %397 = vmatpush1.bf16.msra.mxu0 0
  %398 = vmatprep.subr.bf16.mxu0 0
  %399 = vmatpush1.bf16.msra.mxu0 0
  %400 = vmatprep.subr.bf16.mxu0 0
  %401 = vmatpush1.bf16.msra.mxu0 0
  %402 = vmatprep.subr.bf16.mxu0 0
  %403 = vmatpush1.bf16.msra.mxu0 %v164
  %404 = vmatprep.subr.bf16.mxu0 0
  %405 = vmatpush1.bf16.msra.mxu0 %v163
  %406 = vmatprep.subr.bf16.mxu0 0
  %407 = vmatpush2.bf16.msra.mxu0 0
  %408 = vmatprep.subr.bf16.mxu0 0
  %409 = vmatpush2.bf16.msra.mxu0 0
  %410 = vmatprep.subr.bf16.mxu0 0
  %411 = vmatpush2.bf16.msra.mxu0 0
  %412 = vmatprep.subr.bf16.mxu0 0
  %413 = vmatpush2.bf16.msra.mxu0 0
  %414 = vmatprep.subr.bf16.mxu0 0
  %415 = vmatpush2.bf16.msra.mxu0 0
  %416 = vmatprep.subr.bf16.mxu0 0
  %417 = vmatpush2.bf16.msra.mxu0 0
  %418 = vmatprep.subr.bf16.mxu0 0
  %419 = vmatpush2.bf16.msra.mxu0 0
  %420 = vmatprep.subr.bf16.mxu0 0
  %421 = vmatpush2.bf16.msra.mxu0 0
  %422 = vmatprep.mubr.bf16.mxu0 0
  %423 = vmatmul.mubr.bf16.gmra.mxu0 %v388
  %v424 = vpop.f32.mrf.mxu0
  %v425 = vadd.f32 0.0, %v424
  %v426 = vpop.f32.mrf.mxu0
  %v427 = vpop.f32.mrf.mxu0
  %v428 = vpop.f32.mrf.mxu0
  %429 = vdwg.mxu0
  %v430 = vadd.f32 %v132, %v425
  %v431 = vxor.u32 %v430, 2147483648
  %v432 = vmul.f32 %v431, 1.442695
  %v433 = vpow.pop %v432
  %v434 = vadd.f32 %v433, 1.0
  %v435 = vrcp.pop %v434
  %v436 = vmul.f32 1.0, %v435
  %v437 = vmul.f32 %v436, 2.0
  %v438 = vsub.f32 %v437, 1.0
  %v439 = vmul.f32 %v436, %v376
  %441 = vrot.lane.b32.xlu0 %v438, 64
  %v442 = vpop.permute.xlu0 %441
  %v444 = vmul.f32 %v436, %v442
  %446 = vrot.lane.b32.xlu0 %v444, 32
  %v447 = vpop.permute.xlu0 %446
  %v449 = vadd.f32 %v439, %v447
  %v450 = vtanh.pop %v449
  %452 = vrot.lane.b32.xlu0 %v450, 64
  %v453 = vpop.permute.xlu0 %452
  %v455 = vmul.f32 %v436, %v453
  %v456 = vpack.c.bf16 %v455, %v455
  %458 = vrot.lane.b32.xlu0 %v456, 32
  %v459 = vpop.permute.xlu0 %458
  %v461 = vsel %vm167, %v459, 0
  %463 = vmatprep.subr.bf16.mxu0 0
  %464 = vmatpush1.bf16.msra.mxu0 0
  %465 = vmatprep.subr.bf16.mxu0 0
  %466 = vmatpush1.bf16.msra.mxu0 0
  %467 = vmatprep.subr.bf16.mxu0 0
  %468 = vmatpush1.bf16.msra.mxu0 0
  %469 = vmatprep.subr.bf16.mxu0 0
  %470 = vmatpush1.bf16.msra.mxu0 0
  %471 = vmatprep.subr.bf16.mxu0 0
  %472 = vmatpush1.bf16.msra.mxu0 0
  %473 = vmatprep.subr.bf16.mxu0 0
  %474 = vmatpush1.bf16.msra.mxu0 0
  %475 = vmatprep.subr.bf16.mxu0 0
  %476 = vmatpush1.bf16.msra.mxu0 %v164
  %477 = vmatprep.subr.bf16.mxu0 0
  %478 = vmatpush1.bf16.msra.mxu0 %v163
  %479 = vmatprep.subr.bf16.mxu0 0
  %480 = vmatpush2.bf16.msra.mxu0 0
  %481 = vmatprep.subr.bf16.mxu0 0
  %482 = vmatpush2.bf16.msra.mxu0 0
  %483 = vmatprep.subr.bf16.mxu0 0
  %484 = vmatpush2.bf16.msra.mxu0 0
  %485 = vmatprep.subr.bf16.mxu0 0
  %486 = vmatpush2.bf16.msra.mxu0 0
  %487 = vmatprep.subr.bf16.mxu0 0
  %488 = vmatpush2.bf16.msra.mxu0 0
  %489 = vmatprep.subr.bf16.mxu0 0
  %490 = vmatpush2.bf16.msra.mxu0 0
  %491 = vmatprep.subr.bf16.mxu0 0
  %492 = vmatpush2.bf16.msra.mxu0 0
  %493 = vmatprep.subr.bf16.mxu0 0
  %494 = vmatpush2.bf16.msra.mxu0 0
  %495 = vmatprep.mubr.bf16.mxu0 0
  %496 = vmatmul.mubr.bf16.gmra.mxu0 %v461
  %v497 = vpop.f32.mrf.mxu0
  %v498 = vadd.f32 0.0, %v497
  %v499 = vpop.f32.mrf.mxu0
  %v500 = vpop.f32.mrf.mxu0
  %v501 = vpop.f32.mrf.mxu0
  %502 = vdwg.mxu0
  %v503 = vadd.f32 %v137, %v498
  %v504 = vxor.u32 %v503, 2147483648
  %v505 = vmul.f32 %v504, 1.442695
  %v506 = vpow.pop %v505
  %v507 = vadd.f32 %v506, 1.0
  %v508 = vrcp.pop %v507
  %v509 = vmul.f32 1.0, %v508
  %v510 = vmul.f32 %v509, 2.0
  %v511 = vsub.f32 %v510, 1.0
  %v512 = vmul.f32 %v509, %v449
  %514 = vrot.lane.b32.xlu0 %v511, 64
  %v515 = vpop.permute.xlu0 %514
  %v517 = vmul.f32 %v509, %v515
  %519 = vrot.lane.b32.xlu0 %v517, 32
  %v520 = vpop.permute.xlu0 %519
  %v522 = vadd.f32 %v512, %v520
  %v523 = vtanh.pop %v522
  %525 = vrot.lane.b32.xlu0 %v523, 64
  %v526 = vpop.permute.xlu0 %525
  %v528 = vmul.f32 %v509, %v526
  %v529 = vpack.c.bf16 %v528, %v528
  %531 = vrot.lane.b32.xlu0 %v529, 32
  %v532 = vpop.permute.xlu0 %531
  %v534 = vsel %vm167, %v532, 0
  %536 = vmatprep.subr.bf16.mxu0 0
  %537 = vmatpush1.bf16.msra.mxu0 0
  %538 = vmatprep.subr.bf16.mxu0 0
  %539 = vmatpush1.bf16.msra.mxu0 0
  %540 = vmatprep.subr.bf16.mxu0 0
  %541 = vmatpush1.bf16.msra.mxu0 0
  %542 = vmatprep.subr.bf16.mxu0 0
  %543 = vmatpush1.bf16.msra.mxu0 0
  %544 = vmatprep.subr.bf16.mxu0 0
  %545 = vmatpush1.bf16.msra.mxu0 0
  %546 = vmatprep.subr.bf16.mxu0 0
  %547 = vmatpush1.bf16.msra.mxu0 0
  %548 = vmatprep.subr.bf16.mxu0 0
  %549 = vmatpush1.bf16.msra.mxu0 %v164
  %550 = vmatprep.subr.bf16.mxu0 0
  %551 = vmatpush1.bf16.msra.mxu0 %v163
  %552 = vmatprep.subr.bf16.mxu0 0
  %553 = vmatpush2.bf16.msra.mxu0 0
  %554 = vmatprep.subr.bf16.mxu0 0
  %555 = vmatpush2.bf16.msra.mxu0 0
  %556 = vmatprep.subr.bf16.mxu0 0
  %557 = vmatpush2.bf16.msra.mxu0 0
  %558 = vmatprep.subr.bf16.mxu0 0
  %559 = vmatpush2.bf16.msra.mxu0 0
  %560 = vmatprep.subr.bf16.mxu0 0
  %561 = vmatpush2.bf16.msra.mxu0 0
  %562 = vmatprep.subr.bf16.mxu0 0
  %563 = vmatpush2.bf16.msra.mxu0 0
  %564 = vmatprep.subr.bf16.mxu0 0
  %565 = vmatpush2.bf16.msra.mxu0 0
  %566 = vmatprep.subr.bf16.mxu0 0
  %567 = vmatpush2.bf16.msra.mxu0 0
  %568 = vmatprep.mubr.bf16.mxu0 0
  %569 = vmatmul.mubr.bf16.gmra.mxu0 %v534
  %v570 = vpop.f32.mrf.mxu0
  %v571 = vadd.f32 0.0, %v570
  %v572 = vpop.f32.mrf.mxu0
  %v573 = vpop.f32.mrf.mxu0
  %v574 = vpop.f32.mrf.mxu0
  %575 = vdwg.mxu0
  %v576 = vadd.f32 %v140, %v571
  %v577 = vxor.u32 %v576, 2147483648
  %v578 = vmul.f32 %v577, 1.442695
  %v579 = vpow.pop %v578
  %v580 = vadd.f32 %v579, 1.0
  %v581 = vrcp.pop %v580
  %v582 = vmul.f32 1.0, %v581
  %v583 = vmul.f32 %v582, 2.0
  %v584 = vsub.f32 %v583, 1.0
  %v585 = vmul.f32 %v582, %v522
  %587 = vrot.lane.b32.xlu0 %v584, 64
  %v588 = vpop.permute.xlu0 %587
  %v590 = vmul.f32 %v582, %v588
  %592 = vrot.lane.b32.xlu0 %v590, 32
  %v593 = vpop.permute.xlu0 %592
  %v595 = vadd.f32 %v585, %v593
  %v596 = vtanh.pop %v595
  %598 = vrot.lane.b32.xlu0 %v596, 64
  %v599 = vpop.permute.xlu0 %598
  %v601 = vmul.f32 %v582, %v599
  %v602 = vpack.c.bf16 %v601, %v601
  %604 = vrot.lane.b32.xlu0 %v602, 32
  %v605 = vpop.permute.xlu0 %604
  %v607 = vsel %vm167, %v605, 0
  %609 = vmatprep.subr.bf16.mxu0 0
  %610 = vmatpush1.bf16.msra.mxu0 0
  %611 = vmatprep.subr.bf16.mxu0 0
  %612 = vmatpush1.bf16.msra.mxu0 0
  %613 = vmatprep.subr.bf16.mxu0 0
  %614 = vmatpush1.bf16.msra.mxu0 0
  %615 = vmatprep.subr.bf16.mxu0 0
  %616 = vmatpush1.bf16.msra.mxu0 0
  %617 = vmatprep.subr.bf16.mxu0 0
  %618 = vmatpush1.bf16.msra.mxu0 0
  %619 = vmatprep.subr.bf16.mxu0 0
  %620 = vmatpush1.bf16.msra.mxu0 0
  %621 = vmatprep.subr.bf16.mxu0 0
  %622 = vmatpush1.bf16.msra.mxu0 %v164
  %623 = vmatprep.subr.bf16.mxu0 0
  %624 = vmatpush1.bf16.msra.mxu0 %v163
  %625 = vmatprep.subr.bf16.mxu0 0
  %626 = vmatpush2.bf16.msra.mxu0 0
  %627 = vmatprep.subr.bf16.mxu0 0
  %628 = vmatpush2.bf16.msra.mxu0 0
  %629 = vmatprep.subr.bf16.mxu0 0
  %630 = vmatpush2.bf16.msra.mxu0 0
  %631 = vmatprep.subr.bf16.mxu0 0
  %632 = vmatpush2.bf16.msra.mxu0 0
  %633 = vmatprep.subr.bf16.mxu0 0
  %634 = vmatpush2.bf16.msra.mxu0 0
  %635 = vmatprep.subr.bf16.mxu0 0
  %636 = vmatpush2.bf16.msra.mxu0 0
  %637 = vmatprep.subr.bf16.mxu0 0
  %638 = vmatpush2.bf16.msra.mxu0 0
  %639 = vmatprep.subr.bf16.mxu0 0
  %640 = vmatpush2.bf16.msra.mxu0 0
  %641 = vmatprep.mubr.bf16.mxu0 0
  %642 = vmatmul.mubr.bf16.gmra.mxu0 %v607
  %v643 = vpop.f32.mrf.mxu0
  %v644 = vadd.f32 0.0, %v643
  %v645 = vpop.f32.mrf.mxu0
  %v646 = vpop.f32.mrf.mxu0
  %v647 = vpop.f32.mrf.mxu0
  %648 = vdwg.mxu0
  %v649 = vadd.f32 %v145, %v644
  %v650 = vxor.u32 %v649, 2147483648
  %v651 = vmul.f32 %v650, 1.442695
  %v652 = vpow.pop %v651
  %v653 = vadd.f32 %v652, 1.0
  %v654 = vrcp.pop %v653
  %v655 = vmul.f32 1.0, %v654
  %v656 = vmul.f32 %v655, 2.0
  %v657 = vsub.f32 %v656, 1.0
  %v658 = vmul.f32 %v655, %v595
  %660 = vrot.lane.b32.xlu0 %v657, 64
  %v661 = vpop.permute.xlu0 %660
  %v663 = vmul.f32 %v655, %v661
  %665 = vrot.lane.b32.xlu0 %v663, 32
  %v666 = vpop.permute.xlu0 %665
  %v668 = vadd.f32 %v658, %v666
  %v669 = vtanh.pop %v668
  %671 = vrot.lane.b32.xlu0 %v669, 64
  %v672 = vpop.permute.xlu0 %671
  %v674 = vmul.f32 %v655, %v672
  %v675 = vpack.c.bf16 %v674, %v674
  %677 = vrot.lane.b32.xlu0 %v675, 32
  %v678 = vpop.permute.xlu0 %677
  %v680 = vsel %vm167, %v678, 0
  %682 = vmatprep.subr.bf16.mxu0 0
  %683 = vmatpush1.bf16.msra.mxu0 0
  %684 = vmatprep.subr.bf16.mxu0 0
  %685 = vmatpush1.bf16.msra.mxu0 0
  %686 = vmatprep.subr.bf16.mxu0 0
  %687 = vmatpush1.bf16.msra.mxu0 0
  %688 = vmatprep.subr.bf16.mxu0 0
  %689 = vmatpush1.bf16.msra.mxu0 0
  %690 = vmatprep.subr.bf16.mxu0 0
  %691 = vmatpush1.bf16.msra.mxu0 0
  %692 = vmatprep.subr.bf16.mxu0 0
  %693 = vmatpush1.bf16.msra.mxu0 0
  %694 = vmatprep.subr.bf16.mxu0 0
  %695 = vmatpush1.bf16.msra.mxu0 %v164
  %696 = vmatprep.subr.bf16.mxu0 0
  %697 = vmatpush1.bf16.msra.mxu0 %v163
  %698 = vmatprep.subr.bf16.mxu0 0
  %699 = vmatpush2.bf16.msra.mxu0 0
  %700 = vmatprep.subr.bf16.mxu0 0
  %701 = vmatpush2.bf16.msra.mxu0 0
  %702 = vmatprep.subr.bf16.mxu0 0
  %703 = vmatpush2.bf16.msra.mxu0 0
  %704 = vmatprep.subr.bf16.mxu0 0
  %705 = vmatpush2.bf16.msra.mxu0 0
  %706 = vmatprep.subr.bf16.mxu0 0
  %707 = vmatpush2.bf16.msra.mxu0 0
  %708 = vmatprep.subr.bf16.mxu0 0
  %709 = vmatpush2.bf16.msra.mxu0 0
  %710 = vmatprep.subr.bf16.mxu0 0
  %711 = vmatpush2.bf16.msra.mxu0 0
  %712 = vmatprep.subr.bf16.mxu0 0
  %713 = vmatpush2.bf16.msra.mxu0 0
  %714 = vmatprep.mubr.bf16.mxu0 0
  %715 = vmatmul.mubr.bf16.gmra.mxu0 %v680
  %v716 = vpop.f32.mrf.mxu0
  %v717 = vadd.f32 0.0, %v716
  %v718 = vpop.f32.mrf.mxu0
  %v719 = vpop.f32.mrf.mxu0
  %v720 = vpop.f32.mrf.mxu0
  %721 = vdwg.mxu0
  %v722 = vadd.f32 %v148, %v717
  %v723 = vxor.u32 %v722, 2147483648
  %v724 = vmul.f32 %v723, 1.442695
  %v725 = vpow.pop %v724
  %v726 = vadd.f32 %v725, 1.0
  %v727 = vrcp.pop %v726
  %v728 = vmul.f32 1.0, %v727
  %v729 = vmul.f32 %v728, 2.0
  %v730 = vsub.f32 %v729, 1.0
  %v731 = vmul.f32 %v728, %v668
  %733 = vrot.lane.b32.xlu0 %v730, 64
  %v734 = vpop.permute.xlu0 %733
  %v736 = vmul.f32 %v728, %v734
  %738 = vrot.lane.b32.xlu0 %v736, 32
  %v739 = vpop.permute.xlu0 %738
  %v741 = vadd.f32 %v731, %v739
  %v742 = vtanh.pop %v741
  %744 = vrot.lane.b32.xlu0 %v742, 64
  %v745 = vpop.permute.xlu0 %744
  %v747 = vmul.f32 %v728, %v745
  %v748 = vpack.c.bf16 %v747, %v747
  %v749 = vld [vmem:[%s4] sm:$0xf]
  %v750 = vld [vmem:[%s4 + $0x4] sm:$0xf]
  %v751 = vld [vmem:[%s4 + $0x8] sm:$0xf]
  %v752 = vld [vmem:[%s4 + $0xc] sm:$0xf]
  %v753 = vld [vmem:[%s5] sm:$0x1]
  %v755 = vlaneseq
  %v756 = vshrl.u32 %v755, 7
  %v757 = vsub.s32 0, %v756
  %v758 = vrot.slane %v753, %v757
  %761 = vrot.lane.b32.xlu0 %v748, 32
  %v762 = vpop.permute.xlu0 %761
  %v767 = vunpack.c.l.b16 %v749
  %v768 = vunpack.c.l.b16 %v750
  %v769 = vunpack.c.l.b16 %v751
  %v770 = vunpack.c.l.b16 %v752
  %v771 = vpack.c.b16 %v768, %v767
  %v772 = vpack.c.b16 %v770, %v769
  %v776 = vsel %vm167, %v762, 0
  %778 = vmatprep.subr.bf16.mxu0 0
  %779 = vmatpush1.bf16.msra.mxu0 0
  %780 = vmatprep.subr.bf16.mxu0 0
  %781 = vmatpush1.bf16.msra.mxu0 0
  %782 = vmatprep.subr.bf16.mxu0 0
  %783 = vmatpush1.bf16.msra.mxu0 0
  %784 = vmatprep.subr.bf16.mxu0 0
  %785 = vmatpush1.bf16.msra.mxu0 0
  %786 = vmatprep.subr.bf16.mxu0 0
  %787 = vmatpush1.bf16.msra.mxu0 0
  %788 = vmatprep.subr.bf16.mxu0 0
  %789 = vmatpush1.bf16.msra.mxu0 0
  %790 = vmatprep.subr.bf16.mxu0 0
  %791 = vmatpush1.bf16.msra.mxu0 %v772
  %792 = vmatprep.subr.bf16.mxu0 0
  %793 = vmatpush1.bf16.msra.mxu0 %v771
  %794 = vmatprep.subr.bf16.mxu0 0
  %795 = vmatpush2.bf16.msra.mxu0 0
  %796 = vmatprep.subr.bf16.mxu0 0
  %797 = vmatpush2.bf16.msra.mxu0 0
  %798 = vmatprep.subr.bf16.mxu0 0
  %799 = vmatpush2.bf16.msra.mxu0 0
  %800 = vmatprep.subr.bf16.mxu0 0
  %801 = vmatpush2.bf16.msra.mxu0 0
  %802 = vmatprep.subr.bf16.mxu0 0
  %803 = vmatpush2.bf16.msra.mxu0 0
  %804 = vmatprep.subr.bf16.mxu0 0
  %805 = vmatpush2.bf16.msra.mxu0 0
  %806 = vmatprep.subr.bf16.mxu0 0
  %807 = vmatpush2.bf16.msra.mxu0 0
  %808 = vmatprep.subr.bf16.mxu0 0
  %809 = vmatpush2.bf16.msra.mxu0 0
  %810 = vmatprep.mubr.bf16.mxu0 0
  %811 = vmatmul.mubr.bf16.gmra.mxu0 %v776
  %v812 = vpop.f32.mrf.mxu0
  %v813 = vadd.f32 %v758, %v812
  %v814 = vpop.f32.mrf.mxu0
  %v815 = vpop.f32.mrf.mxu0
  %v816 = vpop.f32.mrf.mxu0
  %817 = vdwg.mxu0
  %v818 = vmax.f32 %v813, 0.0
  %v819 = vpack.c.bf16 %v818, %v818
  %v820 = vld [vmem:[%s6] sm:$0xf]
  %v821 = vld [vmem:[%s6 + $0x4] sm:$0xf]
  %v822 = vld [vmem:[%s7] sm:$0x1]
  %v824 = vlaneseq
  %v825 = vshrl.u32 %v824, 7
  %v826 = vsub.s32 0, %v825
  %v827 = vrot.slane %v822, %v826
  %v831 = vunpack.c.l.b16 %v820
  %v832 = vunpack.c.l.b16 %v821
  %v833 = vpack.c.b16 %v832, %v831
  %v836 = vsel %vm73, %v819, 0
  %838 = vmatprep.subr.bf16.mxu0 0
  %839 = vmatpush1.bf16.msra.mxu0 0
  %840 = vmatprep.subr.bf16.mxu0 0
  %841 = vmatpush1.bf16.msra.mxu0 0
  %842 = vmatprep.subr.bf16.mxu0 0
  %843 = vmatpush1.bf16.msra.mxu0 0
  %844 = vmatprep.subr.bf16.mxu0 0
  %845 = vmatpush1.bf16.msra.mxu0 0
  %846 = vmatprep.subr.bf16.mxu0 0
  %847 = vmatpush1.bf16.msra.mxu0 0
  %848 = vmatprep.subr.bf16.mxu0 0
  %849 = vmatpush1.bf16.msra.mxu0 0
  %850 = vmatprep.subr.bf16.mxu0 0
  %851 = vmatpush1.bf16.msra.mxu0 0
  %852 = vmatprep.subr.bf16.mxu0 0
  %853 = vmatpush1.bf16.msra.mxu0 %v833
  %854 = vmatprep.subr.bf16.mxu0 0
  %855 = vmatpush2.bf16.msra.mxu0 0
  %856 = vmatprep.subr.bf16.mxu0 0
  %857 = vmatpush2.bf16.msra.mxu0 0
  %858 = vmatprep.subr.bf16.mxu0 0
  %859 = vmatpush2.bf16.msra.mxu0 0
  %860 = vmatprep.subr.bf16.mxu0 0
  %861 = vmatpush2.bf16.msra.mxu0 0
  %862 = vmatprep.subr.bf16.mxu0 0
  %863 = vmatpush2.bf16.msra.mxu0 0
  %864 = vmatprep.subr.bf16.mxu0 0
  %865 = vmatpush2.bf16.msra.mxu0 0
  %866 = vmatprep.subr.bf16.mxu0 0
  %867 = vmatpush2.bf16.msra.mxu0 0
  %868 = vmatprep.subr.bf16.mxu0 0
  %869 = vmatpush2.bf16.msra.mxu0 0
  %870 = vmatprep.mubr.bf16.mxu0 0
  %871 = vmatmul.mubr.bf16.gmra.mxu0 %v836
  %v872 = vpop.f32.mrf.mxu0
  %v873 = vadd.f32 %v827, %v872
  %v874 = vpop.f32.mrf.mxu0
  %v875 = vpop.f32.mrf.mxu0
  %v876 = vpop.f32.mrf.mxu0
  %877 = vdwg.mxu0
  %878 = vst [vmem:[%s8] sm:$0xff] %v873
  // Predicated region
  $region34: #{cs_classifier_lstm_forward.1} parent=0 // pred_check
    _
  $region35: #{cs_classifier_lstm_forward.1} parent=0 // pred_check_branch
    %880 = sbr.rel (0) target = $region37
  $region36: #{cs_classifier_lstm_forward.1} parent=0 // pred_region
    _
  $region37: #{cs_classifier_lstm_forward.1} parent=0 // pred_fallthru
    _
  // Predicated region
  $region38: #{cs_classifier_lstm_forward.1} parent=0 // pred_check
    _
  $region39: #{cs_classifier_lstm_forward.1} parent=0 // pred_check_branch
    %882 = sbr.rel (0) target = $region41
  $region40: #{cs_classifier_lstm_forward.1} parent=0 // pred_region
    _
  $region41: #{cs_classifier_lstm_forward.1} parent=0 // pred_fallthru
    _

</llo_original>
